<compile_context>
chip_gen: v7x
topology: tpu7x:2x2x1
jax: 0.10.0
libtpu: 0.0.40
codegen_flags: <defaults>
</compile_context>

<pallas_src>
from functools import partial

import jax
import jax.numpy as jnp
from jax.experimental import pallas as pl
from jax.experimental.pallas import tpu as pltpu


def _round_up(x, m):
    return ((x + m - 1) // m) * m


# ----------------------------- Pallas kernel --------------------------------
def conv_pool_kernel(feat_ref, pos_ref, wf_ref, wp_ref, b_ref, o_ref, *, nsample):
    # feat_ref: (tile_p * nsample, C)      bf16   neighborhood features
    # pos_ref:  (tile_p * nsample, 3)      bf16   relative positions
    # wf_ref:   (C, Cp)                    bf16   feature part of the 1x1 conv
    # wp_ref:   (3, Cp)                    bf16   position part of the 1x1 conv
    # b_ref:    (1, Cp)                    f32    bias (zero-padded to Cp)
    # o_ref:    (tile_p, Cp)               f32    max-pooled output tile
    y = jnp.dot(feat_ref[...], wf_ref[...], preferred_element_type=jnp.float32)
    y = y + jnp.dot(pos_ref[...], wp_ref[...], preferred_element_type=jnp.float32)
    tp = y.shape[0] // nsample
    # (tp*ns, Cp) -> (tp, ns, Cp) is layout-free when nsample % 8 == 0 (f32).
    y = jnp.max(y.reshape(tp, nsample, y.shape[-1]), axis=1)   # max over nsample
    # bias + ReLU after the max: exactly equivalent, nsample x cheaper.
    o_ref[...] = jnp.maximum(y + b_ref[...], 0.0)


def conv_pool_pallas(grouped_feat, rel_pos, w, b, *, tile_p=256,
                     compute_dtype=jnp.bfloat16,
                     vmem_limit_bytes=48 * 1024 * 1024):
    """ConvPool hot path: 1x1 conv + bias + ReLU + max over nsample.

    grouped_feat: [B, npoint, nsample, C]   channels-last neighborhood features
    rel_pos:      [B, npoint, nsample, 3]   channels-last relative positions
    w:            [3 + C, C_out]  (rows 0..2 = position channels, rows 3.. =
                   feature channels, matching torch.cat([dp, fj], dim=1))
    b:            [C_out]
    returns:      [B, C_out, npoint]   (PyTorch output convention)
    """
    B, npoint, nsample, C = grouped_feat.shape
    C_in, C_out = w.shape
    assert C_in == C + 3

    rows = B * npoint
    # Effective row tile: multiple of 8, capped by the (rounded-up) row count.
    tile_p = _round_up(max(8, min(tile_p, _round_up(rows, 8))), 8)
    rows_p = _round_up(rows, tile_p)          # masked tail via zero-padding
    Cp = _round_up(C_out, 128)                # lane-dense output stores

    # Flatten to 2D lane-friendly slabs (contiguous reshape: no data movement).
    feat = grouped_feat.reshape(rows, nsample, C).astype(compute_dtype)
    pos = rel_pos.reshape(rows, nsample, 3).astype(compute_dtype)
    if rows_p != rows:
        feat = jnp.pad(feat, ((0, rows_p - rows), (0, 0), (0, 0)))
        pos = jnp.pad(pos, ((0, rows_p - rows), (0, 0), (0, 0)))
    feat = feat.reshape(rows_p * nsample, C)
    pos = pos.reshape(rows_p * nsample, 3)

    # Split + pad the 1x1-conv weights / bias (zero columns -> ReLU(0)=0).
    wp = jnp.pad(w[:3].astype(compute_dtype), ((0, 0), (0, Cp - C_out)))
    wf = jnp.pad(w[3:].astype(compute_dtype), ((0, 0), (0, Cp - C_out)))
    bp = jnp.pad(b.astype(jnp.float32), (0, Cp - C_out))[None, :]

    grid = (rows_p // tile_p,)
    rows_per_blk = tile_p * nsample

    out = pl.pallas_call(
        partial(conv_pool_kernel, nsample=nsample),
        out_shape=jax.ShapeDtypeStruct((rows_p, Cp), jnp.float32),
        grid_spec=pltpu.PrefetchScalarGridSpec(
            num_scalar_prefetch=0,
            grid=grid,
            in_specs=[
                pl.BlockSpec((rows_per_blk, C), lambda i: (i, 0)),
                pl.BlockSpec((rows_per_blk, 3), lambda i: (i, 0)),
                pl.BlockSpec((C, Cp), lambda i: (0, 0)),
                pl.BlockSpec((3, Cp), lambda i: (0, 0)),
                pl.BlockSpec((1, Cp), lambda i: (0, 0)),
            ],
            out_specs=pl.BlockSpec((tile_p, Cp), lambda i: (i, 0)),
        ),
        compiler_params=pltpu.CompilerParams(
            dimension_semantics=("parallel",),
            vmem_limit_bytes=vmem_limit_bytes,
        ),
    )(feat, pos, wf, wp, bp)

    out = out[:rows, :C_out].reshape(B, npoint, C_out)
    return jnp.transpose(out, (0, 2, 1))      # small output-side transpose only


# ------------------------------ JAX glue -------------------------------------
def knn_grouper(query_xyz, support_xyz, support_features, nsample):
    """Plain-JAX kNN grouper, returning channels-LAST tensors (kernel layout).

    query_xyz:        [B, npoint, 3]
    support_xyz:      [B, nsupport, 3]
    support_features: [B, C, nsupport]
    returns grouped_feat [B, npoint, nsample, C],
            rel_pos      [B, npoint, nsample, 3]
    """
    d2 = jnp.sum(
        (query_xyz[:, :, None, :] - support_xyz[:, None, :, :]) ** 2, axis=-1
    )  # [B, npoint, nsupport]
    _, idx = jax.lax.top_k(-d2, nsample)                          # [B, np, ns]

    grouped_xyz = jax.vmap(lambda xyz, i: xyz[i])(support_xyz, idx)   # [B,np,ns,3]
    feat_last = jnp.transpose(support_features, (0, 2, 1))            # [B,nsup,C] (small)
    grouped_feat = jax.vmap(lambda f, i: f[i])(feat_last, idx)        # [B,np,ns,C]

    rel_pos = grouped_xyz - query_xyz[:, :, None, :]                  # [B,np,ns,3]
    return grouped_feat, rel_pos


# ------------------------------- main ----------------------------------------
if __name__ == "__main__":
    key = jax.random.PRNGKey(0)
    B, C, npoint, nsupport, nsample = 2, 4, 16, 32, 8
    C_in = 3 + C            # CHANNEL_MAP['dp_fj'](C)
    C_out = 32

    k1, k2, k3, k4 = jax.random.split(key, 4)
    support_xyz = jax.random.normal(k1, (B, nsupport, 3), jnp.float32)
    query_xyz = support_xyz[:, :npoint]
    support_features = jax.random.normal(k2, (B, C, nsupport), jnp.float32)

    # Conv2d 1x1 parameters (PyTorch weight [C_out, C_in, 1, 1], bias [C_out]).
    w_oc_ic = jax.random.normal(k3, (C_out, C_in), jnp.float32) * 0.1
    bias = jax.random.normal(k4, (C_out,), jnp.float32) * 0.1
    w_ic_oc = jnp.transpose(w_oc_ic)    # (C_in, C_out): rows 0..2 = dp, 3.. = fj

    # ConvPool.forward (feature_type='dp_fj', reduction='max')
    grouped_feat, rel_pos = knn_grouper(
        query_xyz, support_xyz, support_features, nsample
    )
    out = conv_pool_pallas(grouped_feat, rel_pos, w_ic_oc, bias)
    out = jax.block_until_ready(out)
    assert out.shape == (B, C_out, npoint)

    # Pure-JAX reference in the ORIGINAL op order (conv + bias + ReLU, then max),
    # using the same bf16 matmul inputs -> also validates the bias/ReLU-after-max
    # commutation used inside the kernel.
    agg = jnp.concatenate([rel_pos, grouped_feat], axis=-1)     # [B,np,ns,3+C]
    ref = jnp.einsum(
        "bpsc,co->bpso",
        agg.astype(jnp.bfloat16),
        w_ic_oc.astype(jnp.bfloat16),
        preferred_element_type=jnp.float32,
    )
    ref = jnp.maximum(ref + bias, 0.0)
    ref = jnp.max(ref, axis=2)                                  # [B, np, C_out]
    ref = jnp.transpose(ref, (0, 2, 1))                         # [B, C_out, np]
    assert jnp.allclose(out, ref, atol=2e-2, rtol=2e-2), float(
        jnp.max(jnp.abs(out - ref))
    )

    print("KERNEL_OK")
</pallas_src>

<mosaic_0001>
module attributes {stable_mosaic.version = 11 : i64} {
  func.func @conv_pool_kernel(%arg0: i32, %arg1: memref<256x4xbf16, #tpu.memory_space<vmem>>, %arg2: memref<256x3xbf16, #tpu.memory_space<vmem>>, %arg3: memref<4x128xbf16, #tpu.memory_space<vmem>>, %arg4: memref<3x128xbf16, #tpu.memory_space<vmem>>, %arg5: memref<1x128xf32, #tpu.memory_space<vmem>>, %arg6: memref<32x128xf32, #tpu.memory_space<vmem>>) attributes {dimension_semantics = [#tpu.dimension_semantics<parallel>], iteration_bounds = array<i64: 1>, scalar_prefetch = 0 : i64, scratch_operands = 0 : i64, tpu.core_type = #tpu.core_type<tc>, window_params = [{transform_indices = @transform_0, window_bounds = array<i64: 256, 4>}, {transform_indices = @transform_1, window_bounds = array<i64: 256, 3>}, {pipeline_mode = #tpu.pipeline_mode<synchronous>, transform_indices = @transform_2, window_bounds = array<i64: 4, 128>}, {pipeline_mode = #tpu.pipeline_mode<synchronous>, transform_indices = @transform_3, window_bounds = array<i64: 3, 128>}, {pipeline_mode = #tpu.pipeline_mode<synchronous>, transform_indices = @transform_4, window_bounds = array<i64: 1, 128>}, {transform_indices = @transform_5, window_bounds = array<i64: 32, 128>}]} {
    %c0 = arith.constant 0 : index
    %c0_0 = arith.constant 0 : index
    %0 = vector.load %arg1[%c0, %c0_0] : memref<256x4xbf16, #tpu.memory_space<vmem>>, vector<256x4xbf16>
    %c0_1 = arith.constant 0 : index
    %c0_2 = arith.constant 0 : index
    %1 = vector.load %arg3[%c0_1, %c0_2] : memref<4x128xbf16, #tpu.memory_space<vmem>>, vector<4x128xbf16>
    %cst = arith.constant dense<0.000000e+00> : vector<256x128xf32>
    %2 = tpu.matmul %0, %1, %cst {dimension_numbers = #tpu.dot_dimension_numbers<[1], [0], [0], [1], [0, 0, 1, 1], [], []>} : vector<256x4xbf16>, vector<4x128xbf16>, vector<256x128xf32> -> vector<256x128xf32>
    %c0_3 = arith.constant 0 : index
    %c0_4 = arith.constant 0 : index
    %3 = vector.load %arg2[%c0_3, %c0_4] : memref<256x3xbf16, #tpu.memory_space<vmem>>, vector<256x3xbf16>
    %c0_5 = arith.constant 0 : index
    %c0_6 = arith.constant 0 : index
    %4 = vector.load %arg4[%c0_5, %c0_6] : memref<3x128xbf16, #tpu.memory_space<vmem>>, vector<3x128xbf16>
    %cst_7 = arith.constant dense<0.000000e+00> : vector<256x128xf32>
    %5 = tpu.matmul %3, %4, %cst_7 {dimension_numbers = #tpu.dot_dimension_numbers<[1], [0], [0], [1], [0, 0, 1, 1], [], []>} : vector<256x3xbf16>, vector<3x128xbf16>, vector<256x128xf32> -> vector<256x128xf32>
    %6 = arith.addf %2, %5 : vector<256x128xf32>
    %7 = vector.shape_cast %6 : vector<256x128xf32> to vector<32x8x128xf32>
    %cst_8 = arith.constant dense<0xFF800000> : vector<32x128xf32>
    %8 = vector.multi_reduction <maximumf>, %7, %cst_8 [1] : vector<32x8x128xf32> to vector<32x128xf32>
    %c0_9 = arith.constant 0 : index
    %c0_10 = arith.constant 0 : index
    %9 = vector.load %arg5[%c0_9, %c0_10] : memref<1x128xf32, #tpu.memory_space<vmem>>, vector<1x128xf32>
    %10 = vector.broadcast %9 : vector<1x128xf32> to vector<32x128xf32>
    %11 = arith.addf %8, %10 : vector<32x128xf32>
    %cst_11 = arith.constant 0.000000e+00 : f32
    %12 = vector.broadcast %cst_11 : f32 to vector<32x128xf32>
    %13 = arith.maximumf %11, %12 : vector<32x128xf32>
    %c0_12 = arith.constant 0 : index
    %c0_13 = arith.constant 0 : index
    %14 = vector.load %arg6[%c0_12, %c0_13] : memref<32x128xf32, #tpu.memory_space<vmem>>, vector<32x128xf32>
    tpu.vector_store %arg6[%c0_12, %c0_13], %13 {strides = array<i32>} : memref<32x128xf32, #tpu.memory_space<vmem>>, vector<32x128xf32>,
    return
  }
  func.func @transform_0(%arg0: i32) -> (i32, i32) {
    %c0_i32 = arith.constant 0 : i32
    %c0_i32_0 = arith.constant 0 : i32
    return %arg0, %c0_i32 : i32, i32
  }
  func.func @transform_1(%arg0: i32) -> (i32, i32) {
    %c0_i32 = arith.constant 0 : i32
    %c0_i32_0 = arith.constant 0 : i32
    return %arg0, %c0_i32 : i32, i32
  }
  func.func @transform_2(%arg0: i32) -> (i32, i32) {
    %c0_i32 = arith.constant 0 : i32
    %c0_i32_0 = arith.constant 0 : i32
    %c0_i32_1 = arith.constant 0 : i32
    return %c0_i32, %c0_i32_0 : i32, i32
  }
  func.func @transform_3(%arg0: i32) -> (i32, i32) {
    %c0_i32 = arith.constant 0 : i32
    %c0_i32_0 = arith.constant 0 : i32
    %c0_i32_1 = arith.constant 0 : i32
    return %c0_i32, %c0_i32_0 : i32, i32
  }
  func.func @transform_4(%arg0: i32) -> (i32, i32) {
    %c0_i32 = arith.constant 0 : i32
    %c0_i32_0 = arith.constant 0 : i32
    %c0_i32_1 = arith.constant 0 : i32
    return %c0_i32, %c0_i32_0 : i32, i32
  }
  func.func @transform_5(%arg0: i32) -> (i32, i32) {
    %c0_i32 = arith.constant 0 : i32
    %c0_i32_0 = arith.constant 0 : i32
    return %arg0, %c0_i32 : i32, i32
  }
}

</mosaic_0001>

<llo_original>
// kernel: tpu_custom_call.1
$region0: #{tpu_custom_call.1}
  #allocation0 [shape = 'u32[]', space=smem, size = 0x4, offset = 0x4, fixed_abs, tag = 'smem constant byte address 0x4 - core index']
  #allocation1 [shape = 'u32[144,128]{1,0:T(1,128)}', space=vmem, size = 0x12000, scoped, tag = 'internal scratch']
  %s0 = inlined_call_operand.vmem [shape: bf16[256,4], index: 0, kind: input, shape index: {}]
  %s1 = inlined_call_operand.vmem [shape: bf16[256,3], index: 1, kind: input, shape index: {}]
  %s2 = inlined_call_operand.vmem [shape: bf16[4,128], index: 2, kind: input, shape index: {}]
  %s3 = inlined_call_operand.vmem [shape: bf16[3,128], index: 3, kind: input, shape index: {}]
  %s4 = inlined_call_operand.vmem [shape: f32[1,128], index: 4, kind: input, shape index: {}]
  %s5 = inlined_call_operand.hbm [shape: f32[32,128], index: 5, kind: output, shape index: {}]
  %s6 = sld [smem:[#allocation0]]
  $region30: #{tpu_custom_call.1} parent=0
    _
  %s8 = ssub.s32 1, %s6
  %s9 = scalar_select 0, %s8, %s6
  $region1: #{tpu_custom_call.1} parent=0
    #allocation2 [shape = 'u8[16384]{0}', space=vmem, size = 0x4000, scoped, tag = 'output window, operand 0, single buffered']
    #allocation3 [shape = 's32[1]{0}', space=sflag, size = 0x4, scoped, tag = 'scoped memory for tpu_custom_call.1']
    %10 = vsyncpa [#allocation3], 0
    // Predicated region
    $region2: #{tpu_custom_call.1} parent=1 // pred_check
      _
    $region3: #{tpu_custom_call.1} parent=1 // pred_check_branch
      %12 = sbr.rel (0) target = $region5
    $region4: #{tpu_custom_call.1} parent=1 // pred_region
      _
    $region5: #{tpu_custom_call.1} parent=1 // pred_fallthru
      _
    // Predicated region
    $region6: #{tpu_custom_call.1} parent=1 // pred_check
      _
    $region7: #{tpu_custom_call.1} parent=1 // pred_check_branch
      %14 = sbr.rel (0) target = $region9
    $region8: #{tpu_custom_call.1} parent=1 // pred_region
      _
    $region9: #{tpu_custom_call.1} parent=1 // pred_fallthru
      _
    // Predicated region
    $region10: #{tpu_custom_call.1} parent=1 // pred_check
      _
    $region11: #{tpu_custom_call.1} parent=1 // pred_check_branch
      %16 = sbr.rel (0) target = $region13
    $region12: #{tpu_custom_call.1} parent=1 // pred_region
      _
    $region13: #{tpu_custom_call.1} parent=1 // pred_fallthru
      _
    // Predicated region
    $region14: #{tpu_custom_call.1} parent=1 // pred_check
      _
    $region15: #{tpu_custom_call.1} parent=1 // pred_check_branch
      %18 = sbr.rel (0) target = $region17
    $region16: #{tpu_custom_call.1} parent=1 // pred_region
      _
    $region17: #{tpu_custom_call.1} parent=1 // pred_fallthru
      _
    // Predicated region
    $region18: #{tpu_custom_call.1} parent=1 // pred_check
      _
    $region19: #{tpu_custom_call.1} parent=1 // pred_check_branch
      %20 = sbr.rel (0) target = $region21
    $region20: #{tpu_custom_call.1} parent=1 // pred_region
      _
    $region21: #{tpu_custom_call.1} parent=1 // pred_fallthru
      _
    %v22 = vld [vmem:[%s0] sm:$0xf]
    %v23 = vld [vmem:[%s0 + $0x4] sm:$0xf]
    %v24 = vld [vmem:[%s0 + $0x8] sm:$0xf]
    %v25 = vld [vmem:[%s0 + $0xc] sm:$0xf]
    %v26 = vld [vmem:[%s0 + $0x10] sm:$0xf]
    %v27 = vld [vmem:[%s0 + $0x14] sm:$0xf]
    %v28 = vld [vmem:[%s0 + $0x18] sm:$0xf]
    %v29 = vld [vmem:[%s0 + $0x1c] sm:$0xf]
    %v30 = vld [vmem:[%s0 + $0x20] sm:$0xf]
    %v31 = vld [vmem:[%s0 + $0x24] sm:$0xf]
    %v32 = vld [vmem:[%s0 + $0x28] sm:$0xf]
    %v33 = vld [vmem:[%s0 + $0x2c] sm:$0xf]
    %v34 = vld [vmem:[%s0 + $0x30] sm:$0xf]
    %v35 = vld [vmem:[%s0 + $0x34] sm:$0xf]
    %v36 = vld [vmem:[%s0 + $0x38] sm:$0xf]
    %v37 = vld [vmem:[%s0 + $0x3c] sm:$0xf]
    %v38 = vld [vmem:[%s0 + $0x40] sm:$0xf]
    %v39 = vld [vmem:[%s0 + $0x44] sm:$0xf]
    %v40 = vld [vmem:[%s0 + $0x48] sm:$0xf]
    %v41 = vld [vmem:[%s0 + $0x4c] sm:$0xf]
    %v42 = vld [vmem:[%s0 + $0x50] sm:$0xf]
    %v43 = vld [vmem:[%s0 + $0x54] sm:$0xf]
    %v44 = vld [vmem:[%s0 + $0x58] sm:$0xf]
    %v45 = vld [vmem:[%s0 + $0x5c] sm:$0xf]
    %v46 = vld [vmem:[%s0 + $0x60] sm:$0xf]
    %v47 = vld [vmem:[%s0 + $0x64] sm:$0xf]
    %v48 = vld [vmem:[%s0 + $0x68] sm:$0xf]
    %v49 = vld [vmem:[%s0 + $0x6c] sm:$0xf]
    %v50 = vld [vmem:[%s0 + $0x70] sm:$0xf]
    %v51 = vld [vmem:[%s0 + $0x74] sm:$0xf]
    %v52 = vld [vmem:[%s0 + $0x78] sm:$0xf]
    %v53 = vld [vmem:[%s0 + $0x7c] sm:$0xf]
    %v54 = vld [vmem:[%s2] sm:$0x3]
    %v55 = vld [vmem:[%s1] sm:$0xf]
    %v56 = vld [vmem:[%s1 + $0x4] sm:$0xf]
    %v57 = vld [vmem:[%s1 + $0x8] sm:$0xf]
    %v58 = vld [vmem:[%s1 + $0xc] sm:$0xf]
    %v59 = vld [vmem:[%s1 + $0x10] sm:$0xf]
    %v60 = vld [vmem:[%s1 + $0x14] sm:$0xf]
    %v61 = vld [vmem:[%s1 + $0x18] sm:$0xf]
    %v62 = vld [vmem:[%s1 + $0x1c] sm:$0xf]
    %v63 = vld [vmem:[%s1 + $0x20] sm:$0xf]
    %v64 = vld [vmem:[%s1 + $0x24] sm:$0xf]
    %v65 = vld [vmem:[%s1 + $0x28] sm:$0xf]
    %v66 = vld [vmem:[%s1 + $0x2c] sm:$0xf]
    %v67 = vld [vmem:[%s1 + $0x30] sm:$0xf]
    %v68 = vld [vmem:[%s1 + $0x34] sm:$0xf]
    %v69 = vld [vmem:[%s1 + $0x38] sm:$0xf]
    %v70 = vld [vmem:[%s1 + $0x3c] sm:$0xf]
    %v71 = vld [vmem:[%s1 + $0x40] sm:$0xf]
    %v72 = vld [vmem:[%s1 + $0x44] sm:$0xf]
    %v73 = vld [vmem:[%s1 + $0x48] sm:$0xf]
    %v74 = vld [vmem:[%s1 + $0x4c] sm:$0xf]
    %v75 = vld [vmem:[%s1 + $0x50] sm:$0xf]
    %v76 = vld [vmem:[%s1 + $0x54] sm:$0xf]
    %v77 = vld [vmem:[%s1 + $0x58] sm:$0xf]
    %v78 = vld [vmem:[%s1 + $0x5c] sm:$0xf]
    %v79 = vld [vmem:[%s1 + $0x60] sm:$0xf]
    %v80 = vld [vmem:[%s1 + $0x64] sm:$0xf]
    %v81 = vld [vmem:[%s1 + $0x68] sm:$0xf]
    %v82 = vld [vmem:[%s1 + $0x6c] sm:$0xf]
    %v83 = vld [vmem:[%s1 + $0x70] sm:$0xf]
    %v84 = vld [vmem:[%s1 + $0x74] sm:$0xf]
    %v85 = vld [vmem:[%s1 + $0x78] sm:$0xf]
    %v86 = vld [vmem:[%s1 + $0x7c] sm:$0xf]
    %v87 = vld [vmem:[%s3] sm:$0x3]
    %v120 = vunpack.c.l.b16 %v55
    %v121 = vunpack.c.l.b16 %v56
    %v122 = vunpack.c.l.b16 %v57
    %v123 = vunpack.c.l.b16 %v58
    %v124 = vunpack.c.l.b16 %v59
    %v125 = vunpack.c.l.b16 %v60
    %v126 = vunpack.c.l.b16 %v61
    %v127 = vunpack.c.l.b16 %v62
    %v128 = vunpack.c.l.b16 %v63
    %v129 = vunpack.c.l.b16 %v64
    %v130 = vunpack.c.l.b16 %v65
    %v131 = vunpack.c.l.b16 %v66
    %v132 = vunpack.c.l.b16 %v67
    %v133 = vunpack.c.l.b16 %v68
    %v134 = vunpack.c.l.b16 %v69
    %v135 = vunpack.c.l.b16 %v70
    %v136 = vunpack.c.l.b16 %v71
    %v137 = vunpack.c.l.b16 %v72
    %v138 = vunpack.c.l.b16 %v73
    %v139 = vunpack.c.l.b16 %v74
    %v140 = vunpack.c.l.b16 %v75
    %v141 = vunpack.c.l.b16 %v76
    %v142 = vunpack.c.l.b16 %v77
    %v143 = vunpack.c.l.b16 %v78
    %v144 = vunpack.c.l.b16 %v79
    %v145 = vunpack.c.l.b16 %v80
    %v146 = vunpack.c.l.b16 %v81
    %v147 = vunpack.c.l.b16 %v82
    %v148 = vunpack.c.l.b16 %v83
    %v149 = vunpack.c.l.b16 %v84
    %v150 = vunpack.c.l.b16 %v85
    %v151 = vunpack.c.l.b16 %v86
    %v152 = vpack.c.b16 %v121, %v120
    %v153 = vpack.c.b16 %v123, %v122
    %v154 = vpack.c.b16 %v125, %v124
    %v155 = vpack.c.b16 %v127, %v126
    %v156 = vpack.c.b16 %v129, %v128
    %v157 = vpack.c.b16 %v131, %v130
    %v158 = vpack.c.b16 %v133, %v132
    %v159 = vpack.c.b16 %v135, %v134
    %v160 = vpack.c.b16 %v137, %v136
    %v161 = vpack.c.b16 %v139, %v138
    %v162 = vpack.c.b16 %v141, %v140
    %v163 = vpack.c.b16 %v143, %v142
    %v164 = vpack.c.b16 %v145, %v144
    %v165 = vpack.c.b16 %v147, %v146
    %v166 = vpack.c.b16 %v149, %v148
    %v167 = vpack.c.b16 %v151, %v150
    %vm168 = vcmask 23552
    %v170 = vsel %vm168, %v152, 0
    %v173 = vsel %vm168, %v153, 0
    %v176 = vsel %vm168, %v154, 0
    %v179 = vsel %vm168, %v155, 0
    %v182 = vsel %vm168, %v156, 0
    %v185 = vsel %vm168, %v157, 0
    %v188 = vsel %vm168, %v158, 0
    %v191 = vsel %vm168, %v159, 0
    %v194 = vsel %vm168, %v160, 0
    %v197 = vsel %vm168, %v161, 0
    %v200 = vsel %vm168, %v162, 0
    %v203 = vsel %vm168, %v163, 0
    %v206 = vsel %vm168, %v164, 0
    %v209 = vsel %vm168, %v165, 0
    %v212 = vsel %vm168, %v166, 0
    %v215 = vsel %vm168, %v167, 0
    %vm217 = vcmask 1040384
    %vm218 = vcmask 1041408
    %v219 = vsel %vm217, 4294967295, 65535
    %v220 = vsel %vm218, %v219, 0
    %v222 = vand.u32 %v87, %v220
    %224 = vmatprep.subr.bf16.mxu0 0
    %225 = vmatpush1.bf16.msra.mxu0 %v222
    %226 = vmatprep.subr.bf16.mxu0 0
    %227 = vmatpush1.bf16.msra.mxu0 0
    %228 = vmatprep.subr.bf16.mxu0 0
    %229 = vmatpush1.bf16.msra.mxu0 0
    %230 = vmatprep.subr.bf16.mxu0 0
    %231 = vmatpush1.bf16.msra.mxu0 0
    %232 = vmatprep.subr.bf16.mxu0 0
    %233 = vmatpush1.bf16.msra.mxu0 0
    %234 = vmatprep.subr.bf16.mxu0 0
    %235 = vmatpush1.bf16.msra.mxu0 0
    %236 = vmatprep.subr.bf16.mxu0 0
    %237 = vmatpush1.bf16.msra.mxu0 0
    %238 = vmatprep.subr.bf16.mxu0 0
    %239 = vmatpush1.bf16.msra.mxu0 0
    %240 = vmatprep.subr.bf16.mxu0 0
    %241 = vmatpush1.bf16.msra.mxu0 0
    %242 = vmatprep.subr.bf16.mxu0 0
    %243 = vmatpush1.bf16.msra.mxu0 0
    %244 = vmatprep.subr.bf16.mxu0 0
    %245 = vmatpush1.bf16.msra.mxu0 0
    %246 = vmatprep.subr.bf16.mxu0 0
    %247 = vmatpush1.bf16.msra.mxu0 0
    %248 = vmatprep.subr.bf16.mxu0 0
    %249 = vmatpush1.bf16.msra.mxu0 0
    %250 = vmatprep.subr.bf16.mxu0 0
    %251 = vmatpush1.bf16.msra.mxu0 0
    %252 = vmatprep.subr.bf16.mxu0 0
    %253 = vmatpush1.bf16.msra.mxu0 0
    %254 = vmatprep.subr.bf16.mxu0 0
    %255 = vmatpush1.bf16.msra.mxu0 0
    %256 = vmatprep.mubr.bf16.mxu0 0
    %257 = vmatmul.mubr.bf16.gmra.mrb[0].mxu0 %v170
    %v258 = vpop.f32.mrb[0].mxu0
    %v259 = vadd.f32 0.0, %v258
    %v260 = vpop.f32.mrb[0].mxu0
    %v261 = vpop.f32.mrb[0].mxu0
    %v262 = vadd.f32 0.0, %v261
    %v263 = vpop.f32.mrb[0].mxu0
    %264 = vmatprep.mubr.bf16.mxu0 0
    %265 = vmatmul.mubr.bf16.gmra.mrb[0].mxu0 %v173
    %v266 = vpop.f32.mrb[0].mxu0
    %v267 = vadd.f32 0.0, %v266
    %v268 = vpop.f32.mrb[0].mxu0
    %v269 = vpop.f32.mrb[0].mxu0
    %v270 = vadd.f32 0.0, %v269
    %v271 = vpop.f32.mrb[0].mxu0
    %272 = vmatprep.mubr.bf16.mxu0 0
    %273 = vmatmul.mubr.bf16.gmra.mrb[0].mxu0 %v176
    %v274 = vpop.f32.mrb[0].mxu0
    %v275 = vadd.f32 0.0, %v274
    %v276 = vpop.f32.mrb[0].mxu0
    %v277 = vpop.f32.mrb[0].mxu0
    %v278 = vadd.f32 0.0, %v277
    %v279 = vpop.f32.mrb[0].mxu0
    %280 = vmatprep.mubr.bf16.mxu0 0
    %281 = vmatmul.mubr.bf16.gmra.mrb[0].mxu0 %v179
    %v282 = vpop.f32.mrb[0].mxu0
    %v283 = vadd.f32 0.0, %v282
    %v284 = vpop.f32.mrb[0].mxu0
    %v285 = vpop.f32.mrb[0].mxu0
    %v286 = vadd.f32 0.0, %v285
    %v287 = vpop.f32.mrb[0].mxu0
    %288 = vmatprep.mubr.bf16.mxu0 0
    %289 = vmatmul.mubr.bf16.gmra.mrb[0].mxu0 %v182
    %v290 = vpop.f32.mrb[0].mxu0
    %v291 = vadd.f32 0.0, %v290
    %v292 = vpop.f32.mrb[0].mxu0
    %v293 = vpop.f32.mrb[0].mxu0
    %v294 = vadd.f32 0.0, %v293
    %v295 = vpop.f32.mrb[0].mxu0
    %296 = vmatprep.mubr.bf16.mxu0 0
    %297 = vmatmul.mubr.bf16.gmra.mrb[0].mxu0 %v185
    %v298 = vpop.f32.mrb[0].mxu0
    %v299 = vadd.f32 0.0, %v298
    %v300 = vpop.f32.mrb[0].mxu0
    %v301 = vpop.f32.mrb[0].mxu0
    %v302 = vadd.f32 0.0, %v301
    %v303 = vpop.f32.mrb[0].mxu0
    %304 = vmatprep.mubr.bf16.mxu0 0
    %305 = vmatmul.mubr.bf16.gmra.mrb[0].mxu0 %v188
    %v306 = vpop.f32.mrb[0].mxu0
    %v307 = vadd.f32 0.0, %v306
    %v308 = vpop.f32.mrb[0].mxu0
    %v309 = vpop.f32.mrb[0].mxu0
    %v310 = vadd.f32 0.0, %v309
    %v311 = vpop.f32.mrb[0].mxu0
    %312 = vmatprep.mubr.bf16.mxu0 0
    %313 = vmatmul.mubr.bf16.gmra.mrb[0].mxu0 %v191
    %v314 = vpop.f32.mrb[0].mxu0
    %v315 = vadd.f32 0.0, %v314
    %v316 = vpop.f32.mrb[0].mxu0
    %v317 = vpop.f32.mrb[0].mxu0
    %v318 = vadd.f32 0.0, %v317
    %v319 = vpop.f32.mrb[0].mxu0
    %320 = vmatprep.mubr.bf16.mxu0 0
    %321 = vmatmul.mubr.bf16.gmra.mrb[0].mxu0 %v194
    %v322 = vpop.f32.mrb[0].mxu0
    %v323 = vadd.f32 0.0, %v322
    %v324 = vpop.f32.mrb[0].mxu0
    %v325 = vpop.f32.mrb[0].mxu0
    %v326 = vadd.f32 0.0, %v325
    %v327 = vpop.f32.mrb[0].mxu0
    %328 = vmatprep.mubr.bf16.mxu0 0
    %329 = vmatmul.mubr.bf16.gmra.mrb[0].mxu0 %v197
    %v330 = vpop.f32.mrb[0].mxu0
    %v331 = vadd.f32 0.0, %v330
    %v332 = vpop.f32.mrb[0].mxu0
    %v333 = vpop.f32.mrb[0].mxu0
    %v334 = vadd.f32 0.0, %v333
    %v335 = vpop.f32.mrb[0].mxu0
    %336 = vmatprep.mubr.bf16.mxu0 0
    %337 = vmatmul.mubr.bf16.gmra.mrb[0].mxu0 %v200
    %v338 = vpop.f32.mrb[0].mxu0
    %v339 = vadd.f32 0.0, %v338
    %v340 = vpop.f32.mrb[0].mxu0
    %v341 = vpop.f32.mrb[0].mxu0
    %v342 = vadd.f32 0.0, %v341
    %v343 = vpop.f32.mrb[0].mxu0
    %344 = vmatprep.mubr.bf16.mxu0 0
    %345 = vmatmul.mubr.bf16.gmra.mrb[0].mxu0 %v203
    %v346 = vpop.f32.mrb[0].mxu0
    %v347 = vadd.f32 0.0, %v346
    %v348 = vpop.f32.mrb[0].mxu0
    %v349 = vpop.f32.mrb[0].mxu0
    %v350 = vadd.f32 0.0, %v349
    %v351 = vpop.f32.mrb[0].mxu0
    %352 = vmatprep.mubr.bf16.mxu0 0
    %353 = vmatmul.mubr.bf16.gmra.mrb[0].mxu0 %v206
    %v354 = vpop.f32.mrb[0].mxu0
    %v355 = vadd.f32 0.0, %v354
    %v356 = vpop.f32.mrb[0].mxu0
    %v357 = vpop.f32.mrb[0].mxu0
    %v358 = vadd.f32 0.0, %v357
    %v359 = vpop.f32.mrb[0].mxu0
    %360 = vmatprep.mubr.bf16.mxu0 0
    %361 = vmatmul.mubr.bf16.gmra.mrb[0].mxu0 %v209
    %v362 = vpop.f32.mrb[0].mxu0
    %v363 = vadd.f32 0.0, %v362
    %v364 = vpop.f32.mrb[0].mxu0
    %v365 = vpop.f32.mrb[0].mxu0
    %v366 = vadd.f32 0.0, %v365
    %v367 = vpop.f32.mrb[0].mxu0
    %368 = vmatprep.mubr.bf16.mxu0 0
    %369 = vmatmul.mubr.bf16.gmra.mrb[0].mxu0 %v212
    %v370 = vpop.f32.mrb[0].mxu0
    %v371 = vadd.f32 0.0, %v370
    %v372 = vpop.f32.mrb[0].mxu0
    %v373 = vpop.f32.mrb[0].mxu0
    %v374 = vadd.f32 0.0, %v373
    %v375 = vpop.f32.mrb[0].mxu0
    %376 = vmatprep.mubr.bf16.mxu0 0
    %377 = vmatmul.mubr.bf16.gmra.mrb[0].mxu0 %v215
    %v378 = vpop.f32.mrb[0].mxu0
    %v379 = vadd.f32 0.0, %v378
    %v380 = vpop.f32.mrb[0].mxu0
    %v381 = vpop.f32.mrb[0].mxu0
    %v382 = vadd.f32 0.0, %v381
    %v383 = vpop.f32.mrb[0].mxu0
    %384 = vdwg.mxu0
    %v417 = vunpack.c.l.b16 %v22
    %v418 = vunpack.c.l.b16 %v23
    %v419 = vunpack.c.l.b16 %v24
    %v420 = vunpack.c.l.b16 %v25
    %v421 = vunpack.c.l.b16 %v26
    %v422 = vunpack.c.l.b16 %v27
    %v423 = vunpack.c.l.b16 %v28
    %v424 = vunpack.c.l.b16 %v29
    %v425 = vunpack.c.l.b16 %v30
    %v426 = vunpack.c.l.b16 %v31
    %v427 = vunpack.c.l.b16 %v32
    %v428 = vunpack.c.l.b16 %v33
    %v429 = vunpack.c.l.b16 %v34
    %v430 = vunpack.c.l.b16 %v35
    %v431 = vunpack.c.l.b16 %v36
    %v432 = vunpack.c.l.b16 %v37
    %v433 = vunpack.c.l.b16 %v38
    %v434 = vunpack.c.l.b16 %v39
    %v435 = vunpack.c.l.b16 %v40
    %v436 = vunpack.c.l.b16 %v41
    %v437 = vunpack.c.l.b16 %v42
    %v438 = vunpack.c.l.b16 %v43
    %v439 = vunpack.c.l.b16 %v44
    %v440 = vunpack.c.l.b16 %v45
    %v441 = vunpack.c.l.b16 %v46
    %v442 = vunpack.c.l.b16 %v47
    %v443 = vunpack.c.l.b16 %v48
    %v444 = vunpack.c.l.b16 %v49
    %v445 = vunpack.c.l.b16 %v50
    %v446 = vunpack.c.l.b16 %v51
    %v447 = vunpack.c.l.b16 %v52
    %v448 = vunpack.c.l.b16 %v53
    %v449 = vpack.c.b16 %v418, %v417
    %v450 = vpack.c.b16 %v420, %v419
    %v451 = vpack.c.b16 %v422, %v421
    %v452 = vpack.c.b16 %v424, %v423
    %v453 = vpack.c.b16 %v426, %v425
    %v454 = vpack.c.b16 %v428, %v427
    %v455 = vpack.c.b16 %v430, %v429
    %v456 = vpack.c.b16 %v432, %v431
    %v457 = vpack.c.b16 %v434, %v433
    %v458 = vpack.c.b16 %v436, %v435
    %v459 = vpack.c.b16 %v438, %v437
    %v460 = vpack.c.b16 %v440, %v439
    %v461 = vpack.c.b16 %v442, %v441
    %v462 = vpack.c.b16 %v444, %v443
    %v463 = vpack.c.b16 %v446, %v445
    %v464 = vpack.c.b16 %v448, %v447
    %vm465 = vcmask 31744
    %v467 = vsel %vm465, %v449, 0
    %v470 = vsel %vm465, %v450, 0
    %v473 = vsel %vm465, %v451, 0
    %v476 = vsel %vm465, %v452, 0
    %v479 = vsel %vm465, %v453, 0
    %v482 = vsel %vm465, %v454, 0
    %v485 = vsel %vm465, %v455, 0
    %v488 = vsel %vm465, %v456, 0
    %v491 = vsel %vm465, %v457, 0
    %v494 = vsel %vm465, %v458, 0
    %v497 = vsel %vm465, %v459, 0
    %v500 = vsel %vm465, %v460, 0
    %v503 = vsel %vm465, %v461, 0
    %v506 = vsel %vm465, %v462, 0
    %v509 = vsel %vm465, %v463, 0
    %v512 = vsel %vm465, %v464, 0
    %v515 = vsel %vm218, %v54, 0
    %517 = vmatprep.subr.bf16.mxu0 0
    %518 = vmatpush1.bf16.msra.mxu0 %v515
    %519 = vmatprep.subr.bf16.mxu0 0
    %520 = vmatpush1.bf16.msra.mxu0 0
    %521 = vmatprep.subr.bf16.mxu0 0
    %522 = vmatpush1.bf16.msra.mxu0 0
    %523 = vmatprep.subr.bf16.mxu0 0
    %524 = vmatpush1.bf16.msra.mxu0 0
    %525 = vmatprep.subr.bf16.mxu0 0
    %526 = vmatpush1.bf16.msra.mxu0 0
    %527 = vmatprep.subr.bf16.mxu0 0
    %528 = vmatpush1.bf16.msra.mxu0 0
    %529 = vmatprep.subr.bf16.mxu0 0
    %530 = vmatpush1.bf16.msra.mxu0 0
    %531 = vmatprep.subr.bf16.mxu0 0
    %532 = vmatpush1.bf16.msra.mxu0 0
    %533 = vmatprep.subr.bf16.mxu0 0
    %534 = vmatpush1.bf16.msra.mxu0 0
    %535 = vmatprep.subr.bf16.mxu0 0
    %536 = vmatpush1.bf16.msra.mxu0 0
    %537 = vmatprep.subr.bf16.mxu0 0
    %538 = vmatpush1.bf16.msra.mxu0 0
    %539 = vmatprep.subr.bf16.mxu0 0
    %540 = vmatpush1.bf16.msra.mxu0 0
    %541 = vmatprep.subr.bf16.mxu0 0
    %542 = vmatpush1.bf16.msra.mxu0 0
    %543 = vmatprep.subr.bf16.mxu0 0
    %544 = vmatpush1.bf16.msra.mxu0 0
    %545 = vmatprep.subr.bf16.mxu0 0
    %546 = vmatpush1.bf16.msra.mxu0 0
    %547 = vmatprep.subr.bf16.mxu0 0
    %548 = vmatpush1.bf16.msra.mxu0 0
    %549 = vmatprep.mubr.bf16.mxu0 0
    %550 = vmatmul.mubr.bf16.gmra.mrb[0].mxu0 %v467
    %v551 = vpop.f32.mrb[0].mxu0
    %v552 = vadd.f32 %v259, %v551
    %v553 = vpop.f32.mrb[0].mxu0
    %v554 = vpop.f32.mrb[0].mxu0
    %v555 = vadd.f32 %v262, %v554
    %v556 = vpop.f32.mrb[0].mxu0
    %557 = vmatprep.mubr.bf16.mxu0 0
    %558 = vmatmul.mubr.bf16.gmra.mrb[0].mxu0 %v470
    %v559 = vpop.f32.mrb[0].mxu0
    %v560 = vadd.f32 %v267, %v559
    %v561 = vpop.f32.mrb[0].mxu0
    %v562 = vpop.f32.mrb[0].mxu0
    %v563 = vadd.f32 %v270, %v562
    %v564 = vpop.f32.mrb[0].mxu0
    %565 = vmatprep.mubr.bf16.mxu0 0
    %566 = vmatmul.mubr.bf16.gmra.mrb[0].mxu0 %v473
    %v567 = vpop.f32.mrb[0].mxu0
    %v568 = vadd.f32 %v275, %v567
    %v569 = vpop.f32.mrb[0].mxu0
    %v570 = vpop.f32.mrb[0].mxu0
    %v571 = vadd.f32 %v278, %v570
    %v572 = vpop.f32.mrb[0].mxu0
    %573 = vmatprep.mubr.bf16.mxu0 0
    %574 = vmatmul.mubr.bf16.gmra.mrb[0].mxu0 %v476
    %v575 = vpop.f32.mrb[0].mxu0
    %v576 = vadd.f32 %v283, %v575
    %v577 = vpop.f32.mrb[0].mxu0
    %v578 = vpop.f32.mrb[0].mxu0
    %v579 = vadd.f32 %v286, %v578
    %v580 = vpop.f32.mrb[0].mxu0
    %581 = vmatprep.mubr.bf16.mxu0 0
    %582 = vmatmul.mubr.bf16.gmra.mrb[0].mxu0 %v479
    %v583 = vpop.f32.mrb[0].mxu0
    %v584 = vadd.f32 %v291, %v583
    %v585 = vpop.f32.mrb[0].mxu0
    %v586 = vpop.f32.mrb[0].mxu0
    %v587 = vadd.f32 %v294, %v586
    %v588 = vpop.f32.mrb[0].mxu0
    %589 = vmatprep.mubr.bf16.mxu0 0
    %590 = vmatmul.mubr.bf16.gmra.mrb[0].mxu0 %v482
    %v591 = vpop.f32.mrb[0].mxu0
    %v592 = vadd.f32 %v299, %v591
    %v593 = vpop.f32.mrb[0].mxu0
    %v594 = vpop.f32.mrb[0].mxu0
    %v595 = vadd.f32 %v302, %v594
    %v596 = vpop.f32.mrb[0].mxu0
    %597 = vmatprep.mubr.bf16.mxu0 0
    %598 = vmatmul.mubr.bf16.gmra.mrb[0].mxu0 %v485
    %v599 = vpop.f32.mrb[0].mxu0
    %v600 = vadd.f32 %v307, %v599
    %v601 = vpop.f32.mrb[0].mxu0
    %v602 = vpop.f32.mrb[0].mxu0
    %v603 = vadd.f32 %v310, %v602
    %v604 = vpop.f32.mrb[0].mxu0
    %605 = vmatprep.mubr.bf16.mxu0 0
    %606 = vmatmul.mubr.bf16.gmra.mrb[0].mxu0 %v488
    %v607 = vpop.f32.mrb[0].mxu0
    %v608 = vadd.f32 %v315, %v607
    %v609 = vpop.f32.mrb[0].mxu0
    %v610 = vpop.f32.mrb[0].mxu0
    %v611 = vadd.f32 %v318, %v610
    %v612 = vpop.f32.mrb[0].mxu0
    %613 = vmatprep.mubr.bf16.mxu0 0
    %614 = vmatmul.mubr.bf16.gmra.mrb[0].mxu0 %v491
    %v615 = vpop.f32.mrb[0].mxu0
    %v616 = vadd.f32 %v323, %v615
    %v617 = vpop.f32.mrb[0].mxu0
    %v618 = vpop.f32.mrb[0].mxu0
    %v619 = vadd.f32 %v326, %v618
    %v620 = vpop.f32.mrb[0].mxu0
    %621 = vmatprep.mubr.bf16.mxu0 0
    %622 = vmatmul.mubr.bf16.gmra.mrb[0].mxu0 %v494
    %v623 = vpop.f32.mrb[0].mxu0
    %v624 = vadd.f32 %v331, %v623
    %v625 = vpop.f32.mrb[0].mxu0
    %v626 = vpop.f32.mrb[0].mxu0
    %v627 = vadd.f32 %v334, %v626
    %v628 = vpop.f32.mrb[0].mxu0
    %629 = vmatprep.mubr.bf16.mxu0 0
    %630 = vmatmul.mubr.bf16.gmra.mrb[0].mxu0 %v497
    %v631 = vpop.f32.mrb[0].mxu0
    %v632 = vadd.f32 %v339, %v631
    %v633 = vpop.f32.mrb[0].mxu0
    %v634 = vpop.f32.mrb[0].mxu0
    %v635 = vadd.f32 %v342, %v634
    %v636 = vpop.f32.mrb[0].mxu0
    %637 = vmatprep.mubr.bf16.mxu0 0
    %638 = vmatmul.mubr.bf16.gmra.mrb[0].mxu0 %v500
    %v639 = vpop.f32.mrb[0].mxu0
    %v640 = vadd.f32 %v347, %v639
    %v641 = vpop.f32.mrb[0].mxu0
    %v642 = vpop.f32.mrb[0].mxu0
    %v643 = vadd.f32 %v350, %v642
    %v644 = vpop.f32.mrb[0].mxu0
    %645 = vmatprep.mubr.bf16.mxu0 0
    %646 = vmatmul.mubr.bf16.gmra.mrb[0].mxu0 %v503
    %v647 = vpop.f32.mrb[0].mxu0
    %v648 = vadd.f32 %v355, %v647
    %v649 = vpop.f32.mrb[0].mxu0
    %v650 = vpop.f32.mrb[0].mxu0
    %v651 = vadd.f32 %v358, %v650
    %v652 = vpop.f32.mrb[0].mxu0
    %653 = vmatprep.mubr.bf16.mxu0 0
    %654 = vmatmul.mubr.bf16.gmra.mrb[0].mxu0 %v506
    %v655 = vpop.f32.mrb[0].mxu0
    %v656 = vadd.f32 %v363, %v655
    %v657 = vpop.f32.mrb[0].mxu0
    %v658 = vpop.f32.mrb[0].mxu0
    %v659 = vadd.f32 %v366, %v658
    %v660 = vpop.f32.mrb[0].mxu0
    %661 = vmatprep.mubr.bf16.mxu0 0
    %662 = vmatmul.mubr.bf16.gmra.mrb[0].mxu0 %v509
    %v663 = vpop.f32.mrb[0].mxu0
    %v664 = vadd.f32 %v371, %v663
    %v665 = vpop.f32.mrb[0].mxu0
    %v666 = vpop.f32.mrb[0].mxu0
    %v667 = vadd.f32 %v374, %v666
    %v668 = vpop.f32.mrb[0].mxu0
    %669 = vmatprep.mubr.bf16.mxu0 0
    %670 = vmatmul.mubr.bf16.gmra.mrb[0].mxu0 %v512
    %v671 = vpop.f32.mrb[0].mxu0
    %v672 = vadd.f32 %v379, %v671
    %v673 = vpop.f32.mrb[0].mxu0
    %v674 = vpop.f32.mrb[0].mxu0
    %v675 = vadd.f32 %v382, %v674
    %v676 = vpop.f32.mrb[0].mxu0
    %677 = vdwg.mxu0
    %v678 = vrot.slane %v552, 4
    %v679 = vmax.f32 %v552, %v678
    %v680 = vrot.slane %v679, 2
    %v681 = vmax.f32 %v679, %v680
    %v682 = vrot.slane %v681, 1
    %v683 = vmax.f32 %v681, %v682
    %v684 = vrot.slane %v555, 4
    %v685 = vmax.f32 %v555, %v684
    %v686 = vrot.slane %v685, 2
    %v687 = vmax.f32 %v685, %v686
    %v688 = vrot.slane %v687, 1
    %v689 = vmax.f32 %v687, %v688
    %v690 = vrot.slane %v560, 4
    %v691 = vmax.f32 %v560, %v690
    %v692 = vrot.slane %v691, 2
    %v693 = vmax.f32 %v691, %v692
    %v694 = vrot.slane %v693, 1
    %v695 = vmax.f32 %v693, %v694
    %v696 = vrot.slane %v563, 4
    %v697 = vmax.f32 %v563, %v696
    %v698 = vrot.slane %v697, 2
    %v699 = vmax.f32 %v697, %v698
    %v700 = vrot.slane %v699, 1
    %v701 = vmax.f32 %v699, %v700
    %v702 = vrot.slane %v568, 4
    %v703 = vmax.f32 %v568, %v702
    %v704 = vrot.slane %v703, 2
    %v705 = vmax.f32 %v703, %v704
    %v706 = vrot.slane %v705, 1
    %v707 = vmax.f32 %v705, %v706
    %v708 = vrot.slane %v571, 4
    %v709 = vmax.f32 %v571, %v708
    %v710 = vrot.slane %v709, 2
    %v711 = vmax.f32 %v709, %v710
    %v712 = vrot.slane %v711, 1
    %v713 = vmax.f32 %v711, %v712
    %v714 = vrot.slane %v576, 4
    %v715 = vmax.f32 %v576, %v714
    %v716 = vrot.slane %v715, 2
    %v717 = vmax.f32 %v715, %v716
    %v718 = vrot.slane %v717, 1
    %v719 = vmax.f32 %v717, %v718
    %v720 = vrot.slane %v579, 4
    %v721 = vmax.f32 %v579, %v720
    %v722 = vrot.slane %v721, 2
    %v723 = vmax.f32 %v721, %v722
    %v724 = vrot.slane %v723, 1
    %v725 = vmax.f32 %v723, %v724
    %v726 = vrot.slane %v584, 4
    %v727 = vmax.f32 %v584, %v726
    %v728 = vrot.slane %v727, 2
    %v729 = vmax.f32 %v727, %v728
    %v730 = vrot.slane %v729, 1
    %v731 = vmax.f32 %v729, %v730
    %v732 = vrot.slane %v587, 4
    %v733 = vmax.f32 %v587, %v732
    %v734 = vrot.slane %v733, 2
    %v735 = vmax.f32 %v733, %v734
    %v736 = vrot.slane %v735, 1
    %v737 = vmax.f32 %v735, %v736
    %v738 = vrot.slane %v592, 4
    %v739 = vmax.f32 %v592, %v738
    %v740 = vrot.slane %v739, 2
    %v741 = vmax.f32 %v739, %v740
    %v742 = vrot.slane %v741, 1
    %v743 = vmax.f32 %v741, %v742
    %v744 = vrot.slane %v595, 4
    %v745 = vmax.f32 %v595, %v744
    %v746 = vrot.slane %v745, 2
    %v747 = vmax.f32 %v745, %v746
    %v748 = vrot.slane %v747, 1
    %v749 = vmax.f32 %v747, %v748
    %v750 = vrot.slane %v600, 4
    %v751 = vmax.f32 %v600, %v750
    %v752 = vrot.slane %v751, 2
    %v753 = vmax.f32 %v751, %v752
    %v754 = vrot.slane %v753, 1
    %v755 = vmax.f32 %v753, %v754
    %v756 = vrot.slane %v603, 4
    %v757 = vmax.f32 %v603, %v756
    %v758 = vrot.slane %v757, 2
    %v759 = vmax.f32 %v757, %v758
    %v760 = vrot.slane %v759, 1
    %v761 = vmax.f32 %v759, %v760
    %v762 = vrot.slane %v608, 4
    %v763 = vmax.f32 %v608, %v762
    %v764 = vrot.slane %v763, 2
    %v765 = vmax.f32 %v763, %v764
    %v766 = vrot.slane %v765, 1
    %v767 = vmax.f32 %v765, %v766
    %v768 = vrot.slane %v611, 4
    %v769 = vmax.f32 %v611, %v768
    %v770 = vrot.slane %v769, 2
    %v771 = vmax.f32 %v769, %v770
    %v772 = vrot.slane %v771, 1
    %v773 = vmax.f32 %v771, %v772
    %v774 = vrot.slane %v616, 4
    %v775 = vmax.f32 %v616, %v774
    %v776 = vrot.slane %v775, 2
    %v777 = vmax.f32 %v775, %v776
    %v778 = vrot.slane %v777, 1
    %v779 = vmax.f32 %v777, %v778
    %v780 = vrot.slane %v619, 4
    %v781 = vmax.f32 %v619, %v780
    %v782 = vrot.slane %v781, 2
    %v783 = vmax.f32 %v781, %v782
    %v784 = vrot.slane %v783, 1
    %v785 = vmax.f32 %v783, %v784
    %v786 = vrot.slane %v624, 4
    %v787 = vmax.f32 %v624, %v786
    %v788 = vrot.slane %v787, 2
    %v789 = vmax.f32 %v787, %v788
    %v790 = vrot.slane %v789, 1
    %v791 = vmax.f32 %v789, %v790
    %v792 = vrot.slane %v627, 4
    %v793 = vmax.f32 %v627, %v792
    %v794 = vrot.slane %v793, 2
    %v795 = vmax.f32 %v793, %v794
    %v796 = vrot.slane %v795, 1
    %v797 = vmax.f32 %v795, %v796
    %v798 = vrot.slane %v632, 4
    %v799 = vmax.f32 %v632, %v798
    %v800 = vrot.slane %v799, 2
    %v801 = vmax.f32 %v799, %v800
    %v802 = vrot.slane %v801, 1
    %v803 = vmax.f32 %v801, %v802
    %v804 = vrot.slane %v635, 4
    %v805 = vmax.f32 %v635, %v804
    %v806 = vrot.slane %v805, 2
    %v807 = vmax.f32 %v805, %v806
    %v808 = vrot.slane %v807, 1
    %v809 = vmax.f32 %v807, %v808
    %v810 = vrot.slane %v640, 4
    %v811 = vmax.f32 %v640, %v810
    %v812 = vrot.slane %v811, 2
    %v813 = vmax.f32 %v811, %v812
    %v814 = vrot.slane %v813, 1
    %v815 = vmax.f32 %v813, %v814
    %v816 = vrot.slane %v643, 4
    %v817 = vmax.f32 %v643, %v816
    %v818 = vrot.slane %v817, 2
    %v819 = vmax.f32 %v817, %v818
    %v820 = vrot.slane %v819, 1
    %v821 = vmax.f32 %v819, %v820
    %v822 = vrot.slane %v648, 4
    %v823 = vmax.f32 %v648, %v822
    %v824 = vrot.slane %v823, 2
    %v825 = vmax.f32 %v823, %v824
    %v826 = vrot.slane %v825, 1
    %v827 = vmax.f32 %v825, %v826
    %v828 = vrot.slane %v651, 4
    %v829 = vmax.f32 %v651, %v828
    %v830 = vrot.slane %v829, 2
    %v831 = vmax.f32 %v829, %v830
    %v832 = vrot.slane %v831, 1
    %v833 = vmax.f32 %v831, %v832
    %v834 = vrot.slane %v656, 4
    %v835 = vmax.f32 %v656, %v834
    %v836 = vrot.slane %v835, 2
    %v837 = vmax.f32 %v835, %v836
    %v838 = vrot.slane %v837, 1
    %v839 = vmax.f32 %v837, %v838
    %v840 = vrot.slane %v659, 4
    %v841 = vmax.f32 %v659, %v840
    %v842 = vrot.slane %v841, 2
    %v843 = vmax.f32 %v841, %v842
    %v844 = vrot.slane %v843, 1
    %v845 = vmax.f32 %v843, %v844
    %v846 = vrot.slane %v664, 4
    %v847 = vmax.f32 %v664, %v846
    %v848 = vrot.slane %v847, 2
    %v849 = vmax.f32 %v847, %v848
    %v850 = vrot.slane %v849, 1
    %v851 = vmax.f32 %v849, %v850
    %v852 = vrot.slane %v667, 4
    %v853 = vmax.f32 %v667, %v852
    %v854 = vrot.slane %v853, 2
    %v855 = vmax.f32 %v853, %v854
    %v856 = vrot.slane %v855, 1
    %v857 = vmax.f32 %v855, %v856
    %v858 = vrot.slane %v672, 4
    %v859 = vmax.f32 %v672, %v858
    %v860 = vrot.slane %v859, 2
    %v861 = vmax.f32 %v859, %v860
    %v862 = vrot.slane %v861, 1
    %v863 = vmax.f32 %v861, %v862
    %v864 = vrot.slane %v675, 4
    %v865 = vmax.f32 %v675, %v864
    %v866 = vrot.slane %v865, 2
    %v867 = vmax.f32 %v865, %v866
    %v868 = vrot.slane %v867, 1
    %v869 = vmax.f32 %v867, %v868
    %v870 = vld [vmem:[%s4] sm:$0x1]
    %v872 = vlaneseq
    %v873 = vshrl.u32 %v872, 7
    %v874 = vsub.s32 0, %v873
    %v875 = vrot.slane %v870, %v874
    %v877 = vadd.f32 %v683, %v875
    %v878 = vadd.f32 %v689, %v875
    %v879 = vadd.f32 %v695, %v875
    %v880 = vadd.f32 %v701, %v875
    %v881 = vadd.f32 %v707, %v875
    %v882 = vadd.f32 %v713, %v875
    %v883 = vadd.f32 %v719, %v875
    %v884 = vadd.f32 %v725, %v875
    %v885 = vadd.f32 %v731, %v875
    %v886 = vadd.f32 %v737, %v875
    %v887 = vadd.f32 %v743, %v875
    %v888 = vadd.f32 %v749, %v875
    %v889 = vadd.f32 %v755, %v875
    %v890 = vadd.f32 %v761, %v875
    %v891 = vadd.f32 %v767, %v875
    %v892 = vadd.f32 %v773, %v875
    %v893 = vadd.f32 %v779, %v875
    %v894 = vadd.f32 %v785, %v875
    %v895 = vadd.f32 %v791, %v875
    %v896 = vadd.f32 %v797, %v875
    %v897 = vadd.f32 %v803, %v875
    %v898 = vadd.f32 %v809, %v875
    %v899 = vadd.f32 %v815, %v875
    %v900 = vadd.f32 %v821, %v875
    %v901 = vadd.f32 %v827, %v875
    %v902 = vadd.f32 %v833, %v875
    %v903 = vadd.f32 %v839, %v875
    %v904 = vadd.f32 %v845, %v875
    %v905 = vadd.f32 %v851, %v875
    %v906 = vadd.f32 %v857, %v875
    %v907 = vadd.f32 %v863, %v875
    %v908 = vadd.f32 %v869, %v875
    %v909 = vmax.f32 %v877, 0.0
    %v910 = vmax.f32 %v878, 0.0
    %v911 = vmax.f32 %v879, 0.0
    %v912 = vmax.f32 %v880, 0.0
    %v913 = vmax.f32 %v881, 0.0
    %v914 = vmax.f32 %v882, 0.0
    %v915 = vmax.f32 %v883, 0.0
    %v916 = vmax.f32 %v884, 0.0
    %v917 = vmax.f32 %v885, 0.0
    %v918 = vmax.f32 %v886, 0.0
    %v919 = vmax.f32 %v887, 0.0
    %v920 = vmax.f32 %v888, 0.0
    %v921 = vmax.f32 %v889, 0.0
    %v922 = vmax.f32 %v890, 0.0
    %v923 = vmax.f32 %v891, 0.0
    %v924 = vmax.f32 %v892, 0.0
    %v925 = vmax.f32 %v893, 0.0
    %v926 = vmax.f32 %v894, 0.0
    %v927 = vmax.f32 %v895, 0.0
    %v928 = vmax.f32 %v896, 0.0
    %v929 = vmax.f32 %v897, 0.0
    %v930 = vmax.f32 %v898, 0.0
    %v931 = vmax.f32 %v899, 0.0
    %v932 = vmax.f32 %v900, 0.0
    %v933 = vmax.f32 %v901, 0.0
    %v934 = vmax.f32 %v902, 0.0
    %v935 = vmax.f32 %v903, 0.0
    %v936 = vmax.f32 %v904, 0.0
    %v937 = vmax.f32 %v905, 0.0
    %v938 = vmax.f32 %v906, 0.0
    %v939 = vmax.f32 %v907, 0.0
    %v940 = vmax.f32 %v908, 0.0
    %v973 = vrot.slane %v910, 7
    %vm974 = vcmask 1041409
    %v975 = vsel %vm974, %v973, %v909
    %v976 = vrot.slane %v911, 6
    %vm977 = vcmask 1042434
    %v978 = vsel %vm977, %v976, %v975
    %v979 = vrot.slane %v912, 5
    %vm980 = vcmask 1043459
    %v981 = vsel %vm980, %v979, %v978
    %v982 = vrot.slane %v913, 4
    %vm983 = vcmask 1044484
    %v984 = vsel %vm983, %v982, %v981
    %v985 = vrot.slane %v914, 3
    %vm986 = vcmask 1045509
    %v987 = vsel %vm986, %v985, %v984
    %v988 = vrot.slane %v915, 2
    %vm989 = vcmask 1046534
    %v990 = vsel %vm989, %v988, %v987
    %v991 = vrot.slane %v916, 1
    %vm992 = vcmask 1047559
    %v993 = vsel %vm992, %v991, %v990
    %v994 = vrot.slane %v918, 7
    %v995 = vsel %vm974, %v994, %v917
    %v996 = vrot.slane %v919, 6
    %v997 = vsel %vm977, %v996, %v995
    %v998 = vrot.slane %v920, 5
    %v999 = vsel %vm980, %v998, %v997
    %v1000 = vrot.slane %v921, 4
    %v1001 = vsel %vm983, %v1000, %v999
    %v1002 = vrot.slane %v922, 3
    %v1003 = vsel %vm986, %v1002, %v1001
    %v1004 = vrot.slane %v923, 2
    %v1005 = vsel %vm989, %v1004, %v1003
    %v1006 = vrot.slane %v924, 1
    %v1007 = vsel %vm992, %v1006, %v1005
    %v1008 = vrot.slane %v926, 7
    %v1009 = vsel %vm974, %v1008, %v925
    %v1010 = vrot.slane %v927, 6
    %v1011 = vsel %vm977, %v1010, %v1009
    %v1012 = vrot.slane %v928, 5
    %v1013 = vsel %vm980, %v1012, %v1011
    %v1014 = vrot.slane %v929, 4
    %v1015 = vsel %vm983, %v1014, %v1013
    %v1016 = vrot.slane %v930, 3
    %v1017 = vsel %vm986, %v1016, %v1015
    %v1018 = vrot.slane %v931, 2
    %v1019 = vsel %vm989, %v1018, %v1017
    %v1020 = vrot.slane %v932, 1
    %v1021 = vsel %vm992, %v1020, %v1019
    %v1022 = vrot.slane %v934, 7
    %v1023 = vsel %vm974, %v1022, %v933
    %v1024 = vrot.slane %v935, 6
    %v1025 = vsel %vm977, %v1024, %v1023
    %v1026 = vrot.slane %v936, 5
    %v1027 = vsel %vm980, %v1026, %v1025
    %v1028 = vrot.slane %v937, 4
    %v1029 = vsel %vm983, %v1028, %v1027
    %v1030 = vrot.slane %v938, 3
    %v1031 = vsel %vm986, %v1030, %v1029
    %v1032 = vrot.slane %v939, 2
    %v1033 = vsel %vm989, %v1032, %v1031
    %v1034 = vrot.slane %v940, 1
    %v1035 = vsel %vm992, %v1034, %v1033
    %1040 = vst [vmem:[#allocation2] sm:$0xff] %v993
    %1041 = vst [vmem:[#allocation2 + $0x8] sm:$0xff] %v1007
    %1042 = vst [vmem:[#allocation2 + $0x10] sm:$0xff] %v1021
    %1043 = vst [vmem:[#allocation2 + $0x18] sm:$0xff] %v1035
    // Predicated region
    $region22: #{tpu_custom_call.1} parent=1 // pred_check
      _
    $region23: #{tpu_custom_call.1} parent=1 // pred_check_branch
      %1045 = sbr.rel (0) target = $region25
    $region24: #{tpu_custom_call.1} parent=1 // pred_region
      %s1047 = ssub.s32 512, 512
      %1048 = vsyncadd [#allocation3], %s1047
      %s1049 = sshll.u32 [#allocation2], 4
      %s1050 = int_to_ptr.vmem [resolvable:$true] %s1049
      %1055 = dma.vmem_to_hbm [thread:$0]  %s1050, 512, %s5, [#allocation3], 128, 128, 8
    $region25: #{tpu_custom_call.1} parent=1 // pred_fallthru
      _
    // Predicated region
    $region26: #{tpu_custom_call.1} parent=1 // pred_check
      _
    $region27: #{tpu_custom_call.1} parent=1 // pred_check_branch
      %1057 = sbr.rel (0) target = $region29
    $region28: #{tpu_custom_call.1} parent=1 // pred_region
      %1058 = dma.done [#allocation3], 512
    $region29: #{tpu_custom_call.1} parent=1 // pred_fallthru
      _
    %1059 = vsyncpa [#allocation3], 1

</llo_original>
